<compile_context>
chip_gen: v7x
topology: tpu7x:2x2x1
jax: 0.10.0
libtpu: 0.0.40
codegen_flags: <defaults>
</compile_context>

<pallas_src>
import functools
import math

import jax
import jax.numpy as jnp
from jax import lax
from jax.experimental import pallas as pl
from jax.experimental.pallas import tpu as pltpu

# Hash constants (murmur3 fmix32 variant), expressed as wrapped int32 values.
_GOLDEN = 0x9E3779B1 - (1 << 32)   # -1640531535
_C1 = 0x7FEB352D                   #  2146121005
_C2 = 0x846CA68B - (1 << 32)       # -2073450869


def _cdiv(a, b):
    return -(-a // b)


def _shr_logical(x, k):
    """Logical right shift for int32: arithmetic shift + mask of sign bits."""
    mask = jnp.int32((1 << (32 - k)) - 1)
    return jnp.bitwise_and(jnp.right_shift(x, k), mask)


def _hash_to_uniform(idx, seed_mix, scale, offset):
    """int32 counter -> f32 uniform in [offset, offset + scale * 2^24)."""
    x = jnp.bitwise_xor(idx, seed_mix)
    x = jnp.bitwise_xor(x, _shr_logical(x, 16))
    x = x * jnp.int32(_C1)
    x = jnp.bitwise_xor(x, _shr_logical(x, 15))
    x = x * jnp.int32(_C2)
    x = jnp.bitwise_xor(x, _shr_logical(x, 16))
    bits24 = _shr_logical(x, 8)                       # uniform in [0, 2^24)
    return bits24.astype(jnp.float32) * scale + offset  # single mul + add


def _uniform_kernel(seed_ref, o_ref, *, scale, offset):
    # seed_ref: SMEM scalar-prefetch (1,) int32
    # o_ref:    (TM, W) float32 VMEM tile
    tm, w = o_ref.shape
    i = pl.program_id(0)
    seed_mix = seed_ref[0] * jnp.int32(_GOLDEN)
    base = i * (tm * w)  # flat offset of this block in the padded slab

    # Generate and store in row sub-chunks so intermediates stay small
    # (bounded vreg/VMEM pressure; store path stays clean).
    if tm % 32 == 0:
        ch = 32
    elif tm % 16 == 0:
        ch = 16
    else:
        ch = 8
    n_chunks = tm // ch

    lin = (lax.broadcasted_iota(jnp.int32, (ch, w), 0) * w
           + lax.broadcasted_iota(jnp.int32, (ch, w), 1))
    for c in range(n_chunks):
        r0 = c * ch
        idx = lin + (base + r0 * w)
        o_ref[pl.ds(r0, ch), :] = _hash_to_uniform(idx, seed_mix, scale, offset)


def _choose_tiling(total):
    """Pick (lane_width, row_tile, padded_rows) for a flat slab of `total` f32."""
    # Lane width: wide multiple of 128 for unmasked wide stores, without
    # grossly over-padding tiny tensors.
    w = 128
    for cand in (256, 512, 1024):
        if total >= cand * 8:
            w = cand
    rows = _cdiv(total, w)
    rows8 = _cdiv(rows, 8) * 8
    # Row tile: target ~1 MiB f32 blocks, capped by what's actually needed.
    target_tm = max(8, min(512, (1 << 20) // (4 * w)))
    tm = min(target_tm, rows8)
    if tm >= 32:
        tm -= tm % 32
    tm = max(tm, 8)
    rows_padded = _cdiv(rows8, tm) * tm
    return w, tm, rows_padded


def random_batchwise_init(shape, init_min, init_max, seed=0):
    """Pallas equivalent of RandomBatchwiseInit(init_min, init_max)(*shape)."""
    shape = tuple(int(s) for s in shape)
    total = int(math.prod(shape)) if shape else 1
    w, tm, rows_padded = _choose_tiling(total)

    scale = (float(init_max) - float(init_min)) / float(1 << 24)
    kernel = functools.partial(_uniform_kernel, scale=scale,
                               offset=float(init_min))

    seed_arr = jnp.asarray([seed], dtype=jnp.int32)

    flat = pl.pallas_call(
        kernel,
        out_shape=jax.ShapeDtypeStruct((rows_padded, w), jnp.float32),
        grid_spec=pltpu.PrefetchScalarGridSpec(
            num_scalar_prefetch=1,
            grid=(rows_padded // tm,),
            in_specs=[],
            out_specs=pl.BlockSpec((tm, w), lambda i, seed: (i, 0)),
        ),
        compiler_params=pltpu.CompilerParams(
            # Each tile is an independent stateless hash -> safe to shard
            # across TensorCores (v7x megacore).
            dimension_semantics=("parallel",),
        ),
    )(seed_arr)

    if rows_padded * w == total:
        # Common NN-state case: no padding -> reshape is a free bitcast,
        # no extra HBM round trip.
        return flat.reshape(shape)
    return flat.reshape(-1)[:total].reshape(shape)


if __name__ == "__main__":
    # Small, deterministic example consistent with the module's usage
    # (e.g. batchwise init of a state tensor).
    init_min, init_max = -0.5, 0.5
    shape = (2, 4, 16, 16)

    key = jax.random.PRNGKey(0)
    # Deterministic scalar seed derived from the PRNG key (forward takes no
    # data inputs; the only "inputs" are the requested shape + seed).
    seed = int(jax.random.randint(key, (), 0, 2**31 - 1, dtype=jnp.int32))

    out = random_batchwise_init(shape, init_min, init_max, seed=seed)
    out = jax.block_until_ready(out)

    assert out.shape == shape, out.shape
    assert out.dtype == jnp.float32, out.dtype
    assert bool(jnp.all(out >= init_min)) and bool(jnp.all(out <= init_max))
    # sanity: values are not constant
    assert bool(jnp.std(out) > 0.0)

    print("KERNEL_OK")
</pallas_src>

<mosaic_0001>
module attributes {stable_mosaic.version = 11 : i64} {
  func.func @_uniform_kernel(%arg0: i32, %arg1: memref<1xi32, #tpu.memory_space<smem>>, %arg2: memref<8x256xf32, #tpu.memory_space<vmem>>) attributes {dimension_semantics = [#tpu.dimension_semantics<parallel>], iteration_bounds = array<i64: 1>, scalar_prefetch = 1 : i64, scratch_operands = 0 : i64, tpu.core_type = #tpu.core_type<tc>, window_params = [{transform_indices = @transform_0, window_bounds = array<i64: 8, 256>}]} {
    %c0 = arith.constant 0 : index
    %0 = memref.load %arg1[%c0] : memref<1xi32, #tpu.memory_space<smem>>
    %c-1640531535_i32 = arith.constant -1640531535 : i32
    %1 = arith.muli %0, %c-1640531535_i32 : i32
    %c2048_i32 = arith.constant 2048 : i32
    %2 = arith.muli %arg0, %c2048_i32 : i32
    %3 = tpu.iota {dimensions = array<i32: 0>} : vector<8x256xi32>
    %c256_i32 = arith.constant 256 : i32
    %4 = vector.broadcast %c256_i32 : i32 to vector<8x256xi32>
    %5 = arith.muli %3, %4 : vector<8x256xi32>
    %6 = tpu.iota {dimensions = array<i32: 1>} : vector<8x256xi32>
    %7 = arith.addi %5, %6 : vector<8x256xi32>
    %c0_i32 = arith.constant 0 : i32
    %8 = arith.addi %2, %c0_i32 : i32
    %9 = vector.broadcast %8 : i32 to vector<8x256xi32>
    %10 = arith.addi %7, %9 : vector<8x256xi32>
    %11 = vector.broadcast %1 : i32 to vector<8x256xi32>
    %12 = arith.xori %10, %11 : vector<8x256xi32>
    %c16_i32 = arith.constant 16 : i32
    %13 = vector.broadcast %c16_i32 : i32 to vector<8x256xi32>
    %14 = arith.shrsi %12, %13 : vector<8x256xi32>
    %c65535_i32 = arith.constant 65535 : i32
    %15 = vector.broadcast %c65535_i32 : i32 to vector<8x256xi32>
    %16 = arith.andi %14, %15 : vector<8x256xi32>
    %17 = arith.xori %12, %16 : vector<8x256xi32>
    %c2146121005_i32 = arith.constant 2146121005 : i32
    %18 = vector.broadcast %c2146121005_i32 : i32 to vector<8x256xi32>
    %19 = arith.muli %17, %18 : vector<8x256xi32>
    %c15_i32 = arith.constant 15 : i32
    %20 = vector.broadcast %c15_i32 : i32 to vector<8x256xi32>
    %21 = arith.shrsi %19, %20 : vector<8x256xi32>
    %c131071_i32 = arith.constant 131071 : i32
    %22 = vector.broadcast %c131071_i32 : i32 to vector<8x256xi32>
    %23 = arith.andi %21, %22 : vector<8x256xi32>
    %24 = arith.xori %19, %23 : vector<8x256xi32>
    %c-2073254261_i32 = arith.constant -2073254261 : i32
    %25 = vector.broadcast %c-2073254261_i32 : i32 to vector<8x256xi32>
    %26 = arith.muli %24, %25 : vector<8x256xi32>
    %c16_i32_0 = arith.constant 16 : i32
    %27 = vector.broadcast %c16_i32_0 : i32 to vector<8x256xi32>
    %28 = arith.shrsi %26, %27 : vector<8x256xi32>
    %c65535_i32_1 = arith.constant 65535 : i32
    %29 = vector.broadcast %c65535_i32_1 : i32 to vector<8x256xi32>
    %30 = arith.andi %28, %29 : vector<8x256xi32>
    %31 = arith.xori %26, %30 : vector<8x256xi32>
    %c8_i32 = arith.constant 8 : i32
    %32 = vector.broadcast %c8_i32 : i32 to vector<8x256xi32>
    %33 = arith.shrsi %31, %32 : vector<8x256xi32>
    %c16777215_i32 = arith.constant 16777215 : i32
    %34 = vector.broadcast %c16777215_i32 : i32 to vector<8x256xi32>
    %35 = arith.andi %33, %34 : vector<8x256xi32>
    %36 = arith.sitofp %35 : vector<8x256xi32> to vector<8x256xf32>
    %cst = arith.constant 5.96046448E-8 : f32
    %37 = vector.broadcast %cst : f32 to vector<8x256xf32>
    %38 = arith.mulf %36, %37 : vector<8x256xf32>
    %cst_2 = arith.constant -5.000000e-01 : f32
    %39 = vector.broadcast %cst_2 : f32 to vector<8x256xf32>
    %40 = arith.addf %38, %39 : vector<8x256xf32>
    %c0_3 = arith.constant 0 : index
    %c0_4 = arith.constant 0 : index
    %41 = vector.load %arg2[%c0_3, %c0_4] : memref<8x256xf32, #tpu.memory_space<vmem>>, vector<8x256xf32>
    tpu.vector_store %arg2[%c0_3, %c0_4], %40 {strides = array<i32>} : memref<8x256xf32, #tpu.memory_space<vmem>>, vector<8x256xf32>,
    return
  }
  func.func @transform_0(%arg0: i32, %arg1: memref<1xi32, #tpu.memory_space<smem>>) -> (i32, i32) {
    %c0_i32 = arith.constant 0 : i32
    %c0_i32_0 = arith.constant 0 : i32
    return %arg0, %c0_i32 : i32, i32
  }
}

</mosaic_0001>

<llo_original>
// kernel: tpu_custom_call.1
$region0: #{tpu_custom_call.1}
  #allocation0 [shape = 'u32[]', space=smem, size = 0x4, offset = 0x4, fixed_abs, tag = 'smem constant byte address 0x4 - core index']
  #allocation1 [shape = 'u32[144,128]{1,0:T(1,128)}', space=vmem, size = 0x12000, scoped, tag = 'internal scratch']
  #allocation2 [shape = 's32[1]{0}', space=sflag, size = 0x4, scoped, tag = 'scoped memory for tpu_custom_call.1']
  #allocation3 [shape = 's32[1]{0:T(128)S(6)}', space=smem, size = 0x200, scoped, tag = 'prefetched SMEM operand 0']
  %s0 = inlined_call_operand.<no memory space> [shape: s32[1], index: 0, kind: input, shape index: {}]
  %s1 = inlined_call_operand.hbm [shape: f32[8,256], index: 1, kind: output, shape index: {}]
  %s2 = sld [smem:[#allocation0]]
  $region10: #{tpu_custom_call.1} parent=0
    _
  %s4 = ssub.s32 1, %s2
  %s5 = scalar_select 0, %s4, %s2
  %6 = sst [smem:[#allocation3]] %s0
  $region1: #{tpu_custom_call.1} parent=0
    #allocation4 [shape = 'u8[8192]{0}', space=vmem, size = 0x2000, scoped, tag = 'output window, operand 0, single buffered']
    #allocation5 [shape = 's32[1]{0}', space=sflag, size = 0x4, scoped, tag = 'scoped memory for tpu_custom_call.1']
    %7 = vsyncpa [#allocation5], 0
    %s8 = sld [smem:[#allocation3]]
    %s9 = smul.u32 %s8, 2654435761
    %s10 = smul.u32 0, 2048
    %v11 = vlaneseq
    %v12 = vshrl.u32 %v11, 7
    %v13 = vmul.u32 %v12, 256
    %v14 = vlaneseq
    %v15 = vand.u32 %v14, 127
    %v16 = vadd.s32 %v15, 128
    %v17 = vadd.s32 %v13, %v15
    %v18 = vadd.s32 %v13, %v16
    %v19 = vstv %s10
    %v20 = vadd.s32 %v17, %v19
    %v21 = vadd.s32 %v18, %v19
    %v22 = vstv %s9
    %v23 = vxor.u32 %v20, %v22
    %v24 = vxor.u32 %v21, %v22
    %v25 = vshra.s32 %v23, 16
    %v26 = vshra.s32 %v24, 16
    %v27 = vand.u32 %v25, 65535
    %v28 = vand.u32 %v26, 65535
    %v29 = vxor.u32 %v23, %v27
    %v30 = vxor.u32 %v24, %v28
    %v31 = vmul.u32 %v29, 2146121005
    %v32 = vmul.u32 %v30, 2146121005
    %v33 = vshra.s32 %v31, 15
    %v34 = vshra.s32 %v32, 15
    %v35 = vand.u32 %v33, 131071
    %v36 = vand.u32 %v34, 131071
    %v37 = vxor.u32 %v31, %v35
    %v38 = vxor.u32 %v32, %v36
    %v39 = vmul.u32 %v37, 2221713035
    %v40 = vmul.u32 %v38, 2221713035
    %v41 = vshra.s32 %v39, 16
    %v42 = vshra.s32 %v40, 16
    %v43 = vand.u32 %v41, 65535
    %v44 = vand.u32 %v42, 65535
    %v45 = vxor.u32 %v39, %v43
    %v46 = vxor.u32 %v40, %v44
    %v47 = vshra.s32 %v45, 8
    %v48 = vshra.s32 %v46, 8
    %v49 = vand.u32 %v47, 16777215
    %v50 = vand.u32 %v48, 16777215
    %v51 = vcvt.s32.f32 %v49
    %v52 = vcvt.s32.f32 %v50
    %v53 = vmul.f32 %v51, 5.9604645e-08
    %v54 = vmul.f32 %v52, 5.9604645e-08
    %v55 = vadd.f32 %v53, -0.5
    %v56 = vadd.f32 %v54, -0.5
    %57 = vst [vmem:[#allocation4] sm:$0xff] %v55
    %58 = vst [vmem:[#allocation4 + $0x8] sm:$0xff] %v56
    // Predicated region
    $region2: #{tpu_custom_call.1} parent=1 // pred_check
      _
    $region3: #{tpu_custom_call.1} parent=1 // pred_check_branch
      %60 = sbr.rel (0) target = $region5
    $region4: #{tpu_custom_call.1} parent=1 // pred_region
      %s62 = ssub.s32 256, 256
      %63 = vsyncadd [#allocation5], %s62
      %s65 = sshll.u32 [#allocation4], 4
      %s66 = int_to_ptr.vmem [resolvable:$true] %s65
      %68 = dma.vmem_to_hbm [thread:$0]  %s66, 256, %s1, [#allocation5]
    $region5: #{tpu_custom_call.1} parent=1 // pred_fallthru
      _
    // Predicated region
    $region6: #{tpu_custom_call.1} parent=1 // pred_check
      _
    $region7: #{tpu_custom_call.1} parent=1 // pred_check_branch
      %70 = sbr.rel (0) target = $region9
    $region8: #{tpu_custom_call.1} parent=1 // pred_region
      %71 = dma.done [#allocation5], 256
    $region9: #{tpu_custom_call.1} parent=1 // pred_fallthru
      _
    %72 = vsyncpa [#allocation5], 1

</llo_original>
